<compile_context>
chip_gen: v7x
topology: tpu7x:2x2x1
jax: 0.10.0
libtpu: 0.0.40
codegen_flags: <defaults>
</compile_context>

<pallas_src>
import functools

import jax
import jax.numpy as jnp
from jax.experimental import pallas as pl
from jax.experimental.pallas import tpu as pltpu


def _round_up(v, m):
    return (v + m - 1) // m * m


def _ff_row_kernel(x_ref, w1_ref, b1_ref, w2_ref, b2_ref, o_ref, acc_ref,
                   *, h_chunk, n_h):
    """One (tm, Dp) row tile of the fused Linear -> GELU -> Linear MLP.

    The hidden axis is processed in `h_chunk`-wide slices so the live f32 GELU
    intermediate stays (tm, h_chunk); partial products accumulate into a
    resident f32 VMEM scratch and the bias/cast epilogue runs once at the end.
    """
    x = x_ref[...].astype(w1_ref.dtype)          # MXU operand dtype = weight dtype
    acc_ref[...] = jnp.zeros_like(acc_ref)

    def compute_chunk(hs):
        h = jnp.dot(x, w1_ref[:, pl.ds(hs, h_chunk)],
                    preferred_element_type=jnp.float32)
        h = h + b1_ref[:, pl.ds(hs, h_chunk)]
        # TODO(synk): PyTorch F.gelu default is exact (erf); tanh-approx GELU here.
        h = jax.nn.gelu(h, approximate=True)
        acc_ref[...] += jnp.dot(h.astype(w2_ref.dtype),
                                w2_ref[pl.ds(hs, h_chunk), :],
                                preferred_element_type=jnp.float32)

    if n_h == 1:
        compute_chunk(0)
    else:
        def body(c, carry):
            compute_chunk(pl.multiple_of(c * h_chunk, h_chunk))
            return carry
        jax.lax.fori_loop(0, n_h, body, 0, unroll=(n_h <= 8))

    o_ref[...] = (acc_ref[...] + b2_ref[...]).astype(o_ref.dtype)


def chunk_feedforward(x, w1, b1, w2, b2, *, chunks, tile_m=256, h_tile=512,
                      matmul_dtype=None):
    """Pallas equivalent of Chunk(chunks, FeedForward, along_dim=1)(x).

    `chunks` is kept for API parity only: FeedForward is per-token, so the
    chunk -> fn -> concat structure is a mathematical no-op for the result
    (holds for any chunk sizes, including torch.chunk's unequal last chunk).
    """
    del chunks
    B, N, D = x.shape
    H = w1.shape[1]
    out_dtype = x.dtype
    mm_dtype = jnp.dtype(matmul_dtype) if matmul_dtype is not None else jnp.dtype(x.dtype)

    lane = 128
    sublane = 16 if out_dtype == jnp.bfloat16 else 8

    M = B * N
    Dp = _round_up(D, lane)
    # Hidden axis: pad to a multiple of the in-kernel H chunk (lane-aligned).
    Hp = _round_up(H, lane)
    h_chunk = min(_round_up(h_tile, lane), Hp)
    Hp = _round_up(Hp, h_chunk)
    n_h = Hp // h_chunk

    # Row tile: sublane-aligned; guarantee >= 2 grid steps when possible so both
    # v7x TensorCores get work through dimension_semantics=("parallel",).
    tm = max(sublane, min(_round_up(tile_m, sublane), _round_up(M, sublane)))
    if M > sublane and pl.cdiv(M, tm) < 2:
        tm = max(sublane, _round_up(pl.cdiv(M, 2), sublane))
    grid = (pl.cdiv(M, tm),)

    # Feature-dim zero padding only (exact). No M padding: Pallas masks the
    # ragged last row tile itself, avoiding extra HBM round-trips.
    x2 = x.reshape(M, D)
    if Dp != D:
        x2 = jnp.pad(x2, ((0, 0), (0, Dp - D)))
    w1p = w1.astype(mm_dtype)
    w2p = w2.astype(mm_dtype)
    if (Dp, Hp) != (D, H):
        w1p = jnp.pad(w1p, ((0, Dp - D), (0, Hp - H)))
        w2p = jnp.pad(w2p, ((0, Hp - H), (0, Dp - D)))
    b1p = b1.astype(jnp.float32).reshape(1, H)
    b2p = b2.astype(jnp.float32).reshape(1, D)
    if Hp != H:
        b1p = jnp.pad(b1p, ((0, 0), (0, Hp - H)))
    if Dp != D:
        b2p = jnp.pad(b2p, ((0, 0), (0, Dp - D)))

    in_isz = jnp.dtype(out_dtype).itemsize
    w_isz = jnp.dtype(mm_dtype).itemsize

    # Explicit scoped-VMEM budget: double-buffered x/out row tiles,
    # single-buffered weights/biases, f32 accumulator, live GELU chunk.
    vmem_bytes = (
        2 * tm * Dp * in_isz              # x row tiles
        + 2 * tm * Dp * in_isz            # out row tiles
        + 2 * Dp * Hp * w_isz             # W1 + W2 (single-buffered, resident)
        + (Hp + Dp) * 4                   # biases (f32)
        + tm * Dp * 4                     # f32 accumulator scratch
        + tm * h_chunk * (4 + w_isz)      # live GELU intermediate + recast
    )
    vmem_limit = max(32 << 20, min(128 << 20, int(vmem_bytes * 3 // 2) + (4 << 20)))

    cost = pl.CostEstimate(
        flops=4 * M * Dp * Hp,            # two matmuls: 2*M*D*H FLOPs each
        transcendentals=M * Hp,           # tanh inside GELU
        bytes_accessed=2 * M * Dp * in_isz + 2 * Dp * Hp * w_isz + (Hp + Dp) * 4,
    )

    kernel = functools.partial(_ff_row_kernel, h_chunk=h_chunk, n_h=n_h)

    out = pl.pallas_call(
        kernel,
        out_shape=jax.ShapeDtypeStruct((M, Dp), out_dtype),
        grid_spec=pltpu.PrefetchScalarGridSpec(
            num_scalar_prefetch=0,
            grid=grid,
            in_specs=[
                # Streamed activation row tiles (default double-buffering).
                pl.BlockSpec((tm, Dp), lambda i: (i, 0)),
                # Resident weights/biases: constant index_map + single buffer.
                pl.BlockSpec((Dp, Hp), lambda i: (0, 0), pipeline_mode=pl.Buffered(1)),
                pl.BlockSpec((1, Hp), lambda i: (0, 0), pipeline_mode=pl.Buffered(1)),
                pl.BlockSpec((Hp, Dp), lambda i: (0, 0), pipeline_mode=pl.Buffered(1)),
                pl.BlockSpec((1, Dp), lambda i: (0, 0), pipeline_mode=pl.Buffered(1)),
            ],
            out_specs=pl.BlockSpec((tm, Dp), lambda i: (i, 0)),
            scratch_shapes=[pltpu.VMEM((tm, Dp), jnp.float32)],
        ),
        compiler_params=pltpu.CompilerParams(
            dimension_semantics=("parallel",),   # row tiles shard across TCs
            vmem_limit_bytes=vmem_limit,
        ),
        cost_estimate=cost,
    )(x2, w1p, b1p, w2p, b2p)

    if Dp != D:
        out = out[:, :D]
    return out.reshape(B, N, D)


def _feedforward_ref(x, w1, b1, w2, b2):
    h = jax.nn.gelu(x @ w1 + b1, approximate=True)
    return h @ w2 + b2


def _chunk_ref(x, w1, b1, w2, b2, chunks):
    # Pure-JAX mirror of the PyTorch Chunk.forward semantics (along_dim=1).
    if chunks == 1:
        return _feedforward_ref(x, w1, b1, w2, b2)
    parts = jnp.split(x, chunks, axis=1)
    return jnp.concatenate(
        [_feedforward_ref(c, w1, b1, w2, b2) for c in parts], axis=1)


def _run_case(key, B, N, D, H, chunks, **kw):
    kx, k1, k2, k3, k4 = jax.random.split(key, 5)
    x = jax.random.normal(kx, (B, N, D), dtype=jnp.float32)
    w1 = jax.random.normal(k1, (D, H), dtype=jnp.float32) * (1.0 / D ** 0.5)
    b1 = jax.random.normal(k2, (1, H), dtype=jnp.float32) * 0.01
    w2 = jax.random.normal(k3, (H, D), dtype=jnp.float32) * (1.0 / H ** 0.5)
    b2 = jax.random.normal(k4, (1, D), dtype=jnp.float32) * 0.01

    fn = jax.jit(functools.partial(chunk_feedforward, chunks=chunks, **kw))
    out = fn(x, w1, b1, w2, b2)
    jax.block_until_ready(out)

    ref = _chunk_ref(x, w1, b1, w2, b2, chunks)
    assert out.shape == (B, N, D)
    err = float(jnp.max(jnp.abs(out - ref)))
    assert jnp.allclose(out, ref, atol=1e-5, rtol=1e-5), err


if __name__ == "__main__":
    key = jax.random.PRNGKey(0)
    k0, k1 = jax.random.split(key)

    # Canonical small case: chunks=2 along the sequence axis.
    _run_case(k0, B=2, N=16, D=32, H=64, chunks=2)
    # Ragged last row tile + multi-chunk H path (fori_loop + masked writes).
    _run_case(k1, B=2, N=9, D=32, H=256, chunks=3, h_tile=128)

    print("KERNEL_OK")
</pallas_src>

<mosaic_0001>
module attributes {stable_mosaic.version = 11 : i64} {
  func.func @_ff_row_kernel(%arg0: i32, %arg1: memref<16x128xf32, #tpu.memory_space<vmem>>, %arg2: memref<128x128xf32, #tpu.memory_space<vmem>>, %arg3: memref<1x128xf32, #tpu.memory_space<vmem>>, %arg4: memref<128x128xf32, #tpu.memory_space<vmem>>, %arg5: memref<1x128xf32, #tpu.memory_space<vmem>>, %arg6: memref<16x128xf32, #tpu.memory_space<vmem>>, %arg7: memref<16x128xf32, #tpu.memory_space<vmem>>) attributes {dimension_semantics = [#tpu.dimension_semantics<parallel>], iteration_bounds = array<i64: 2>, scalar_prefetch = 0 : i64, scratch_operands = 1 : i64, tpu.core_type = #tpu.core_type<tc>, window_params = [{transform_indices = @transform_0, window_bounds = array<i64: 16, 128>}, {pipeline_mode = #tpu.pipeline_mode<synchronous>, transform_indices = @transform_1, window_bounds = array<i64: 128, 128>}, {pipeline_mode = #tpu.pipeline_mode<synchronous>, transform_indices = @transform_2, window_bounds = array<i64: 1, 128>}, {pipeline_mode = #tpu.pipeline_mode<synchronous>, transform_indices = @transform_3, window_bounds = array<i64: 128, 128>}, {pipeline_mode = #tpu.pipeline_mode<synchronous>, transform_indices = @transform_4, window_bounds = array<i64: 1, 128>}, {transform_indices = @transform_5, window_bounds = array<i64: 16, 128>}]} {
    %c0 = arith.constant 0 : index
    %c0_0 = arith.constant 0 : index
    %0 = vector.load %arg1[%c0, %c0_0] : memref<16x128xf32, #tpu.memory_space<vmem>>, vector<16x128xf32>
    %cst = arith.constant 0.000000e+00 : f32
    %1 = vector.broadcast %cst : f32 to vector<16x128xf32>
    %c0_1 = arith.constant 0 : index
    %c0_2 = arith.constant 0 : index
    %2 = vector.load %arg7[%c0_1, %c0_2] : memref<16x128xf32, #tpu.memory_space<vmem>>, vector<16x128xf32>
    tpu.vector_store %arg7[%c0_1, %c0_2], %1 {strides = array<i32>} : memref<16x128xf32, #tpu.memory_space<vmem>>, vector<16x128xf32>,
    %c0_3 = arith.constant 0 : index
    %c0_4 = arith.constant 0 : index
    %3 = vector.load %arg2[%c0_3, %c0_4] : memref<128x128xf32, #tpu.memory_space<vmem>>, vector<128x128xf32>
    %cst_5 = arith.constant dense<0.000000e+00> : vector<16x128xf32>
    %4 = tpu.matmul %0, %3, %cst_5 {dimension_numbers = #tpu.dot_dimension_numbers<[1], [0], [0], [1], [0, 0, 1, 1], [], []>} : vector<16x128xf32>, vector<128x128xf32>, vector<16x128xf32> -> vector<16x128xf32>
    %c0_6 = arith.constant 0 : index
    %c0_7 = arith.constant 0 : index
    %5 = vector.load %arg3[%c0_6, %c0_7] : memref<1x128xf32, #tpu.memory_space<vmem>>, vector<1x128xf32>
    %6 = vector.broadcast %5 : vector<1x128xf32> to vector<16x128xf32>
    %7 = arith.addf %4, %6 : vector<16x128xf32>
    %8 = arith.mulf %7, %7 : vector<16x128xf32>
    %9 = arith.mulf %7, %8 : vector<16x128xf32>
    %cst_8 = arith.constant 4.471500e-02 : f32
    %10 = vector.broadcast %cst_8 : f32 to vector<16x128xf32>
    %11 = arith.mulf %10, %9 : vector<16x128xf32>
    %12 = arith.addf %7, %11 : vector<16x128xf32>
    %cst_9 = arith.constant 0.797884583 : f32
    %13 = vector.broadcast %cst_9 : f32 to vector<16x128xf32>
    %14 = arith.mulf %13, %12 : vector<16x128xf32>
    %15 = math.tanh %14 : vector<16x128xf32>
    %cst_10 = arith.constant 1.000000e+00 : f32
    %16 = vector.broadcast %cst_10 : f32 to vector<16x128xf32>
    %17 = arith.addf %16, %15 : vector<16x128xf32>
    %cst_11 = arith.constant 5.000000e-01 : f32
    %18 = vector.broadcast %cst_11 : f32 to vector<16x128xf32>
    %19 = arith.mulf %18, %17 : vector<16x128xf32>
    %20 = arith.mulf %7, %19 : vector<16x128xf32>
    %c0_12 = arith.constant 0 : index
    %c0_13 = arith.constant 0 : index
    %21 = vector.load %arg7[%c0_12, %c0_13] : memref<16x128xf32, #tpu.memory_space<vmem>>, vector<16x128xf32>
    %c0_14 = arith.constant 0 : index
    %c0_15 = arith.constant 0 : index
    %22 = vector.load %arg4[%c0_14, %c0_15] : memref<128x128xf32, #tpu.memory_space<vmem>>, vector<128x128xf32>
    %cst_16 = arith.constant dense<0.000000e+00> : vector<16x128xf32>
    %23 = tpu.matmul %20, %22, %cst_16 {dimension_numbers = #tpu.dot_dimension_numbers<[1], [0], [0], [1], [0, 0, 1, 1], [], []>} : vector<16x128xf32>, vector<128x128xf32>, vector<16x128xf32> -> vector<16x128xf32>
    %24 = arith.addf %21, %23 : vector<16x128xf32>
    %c0_17 = arith.constant 0 : index
    %c0_18 = arith.constant 0 : index
    %25 = vector.load %arg7[%c0_17, %c0_18] : memref<16x128xf32, #tpu.memory_space<vmem>>, vector<16x128xf32>
    tpu.vector_store %arg7[%c0_17, %c0_18], %24 {strides = array<i32>} : memref<16x128xf32, #tpu.memory_space<vmem>>, vector<16x128xf32>,
    %c0_19 = arith.constant 0 : index
    %c0_20 = arith.constant 0 : index
    %26 = vector.load %arg7[%c0_19, %c0_20] : memref<16x128xf32, #tpu.memory_space<vmem>>, vector<16x128xf32>
    %c0_21 = arith.constant 0 : index
    %c0_22 = arith.constant 0 : index
    %27 = vector.load %arg5[%c0_21, %c0_22] : memref<1x128xf32, #tpu.memory_space<vmem>>, vector<1x128xf32>
    %28 = vector.broadcast %27 : vector<1x128xf32> to vector<16x128xf32>
    %29 = arith.addf %26, %28 : vector<16x128xf32>
    %c0_23 = arith.constant 0 : index
    %c0_24 = arith.constant 0 : index
    %30 = vector.load %arg6[%c0_23, %c0_24] : memref<16x128xf32, #tpu.memory_space<vmem>>, vector<16x128xf32>
    tpu.vector_store %arg6[%c0_23, %c0_24], %29 {strides = array<i32>} : memref<16x128xf32, #tpu.memory_space<vmem>>, vector<16x128xf32>,
    return
  }
  func.func @transform_0(%arg0: i32) -> (i32, i32) {
    %c0_i32 = arith.constant 0 : i32
    %c0_i32_0 = arith.constant 0 : i32
    return %arg0, %c0_i32 : i32, i32
  }
  func.func @transform_1(%arg0: i32) -> (i32, i32) {
    %c0_i32 = arith.constant 0 : i32
    %c0_i32_0 = arith.constant 0 : i32
    %c0_i32_1 = arith.constant 0 : i32
    return %c0_i32, %c0_i32_0 : i32, i32
  }
  func.func @transform_2(%arg0: i32) -> (i32, i32) {
    %c0_i32 = arith.constant 0 : i32
    %c0_i32_0 = arith.constant 0 : i32
    %c0_i32_1 = arith.constant 0 : i32
    return %c0_i32, %c0_i32_0 : i32, i32
  }
  func.func @transform_3(%arg0: i32) -> (i32, i32) {
    %c0_i32 = arith.constant 0 : i32
    %c0_i32_0 = arith.constant 0 : i32
    %c0_i32_1 = arith.constant 0 : i32
    return %c0_i32, %c0_i32_0 : i32, i32
  }
  func.func @transform_4(%arg0: i32) -> (i32, i32) {
    %c0_i32 = arith.constant 0 : i32
    %c0_i32_0 = arith.constant 0 : i32
    %c0_i32_1 = arith.constant 0 : i32
    return %c0_i32, %c0_i32_0 : i32, i32
  }
  func.func @transform_5(%arg0: i32) -> (i32, i32) {
    %c0_i32 = arith.constant 0 : i32
    %c0_i32_0 = arith.constant 0 : i32
    return %arg0, %c0_i32 : i32, i32
  }
}

</mosaic_0001>

<llo_original>
// kernel: chunk_feedforward.1
$region0: #{chunk_feedforward.1}
  #allocation0 [shape = 'u32[]', space=smem, size = 0x4, offset = 0x4, fixed_abs, tag = 'smem constant byte address 0x4 - core index']
  #allocation1 [shape = 'u32[144,128]{1,0:T(1,128)}', space=vmem, size = 0x12000, scoped, tag = 'internal scratch']
  #allocation2 [shape = 'f32[16,128]{1,0:T(8,128)}', space=vmem, size = 0x2000, scoped, tag = 'scratch operand']
  %s0 = inlined_call_operand.vmem [shape: f32[32,128], index: 0, kind: input, shape index: {}]
  %s1 = inlined_call_operand.vmem [shape: f32[128,128], index: 1, kind: input, shape index: {}]
  %s2 = inlined_call_operand.vmem [shape: f32[1,128], index: 2, kind: input, shape index: {}]
  %s3 = inlined_call_operand.vmem [shape: f32[128,128], index: 3, kind: input, shape index: {}]
  %s4 = inlined_call_operand.vmem [shape: f32[1,128], index: 4, kind: input, shape index: {}]
  %s5 = inlined_call_operand.hbm [shape: f32[32,128], index: 5, kind: output, shape index: {}]
  %s6 = sld [smem:[#allocation0]]
  $region53: #{chunk_feedforward.1} parent=0
    _
  %s8 = ssub.s32 1, %s6
  %s9 = scalar_select 0, %s8, %s6
  $region1: #{chunk_feedforward.1} parent=0
    #allocation3 [shape = 'u8[16384]{0}', space=vmem, size = 0x4000, scoped, tag = 'output window, operand 0']
    #allocation4 [shape = 's32[2]{0}', space=sflag, size = 0x8, scoped, tag = 'scoped memory for chunk_feedforward.1']
    %10 = vsyncpa [#allocation4], 0
    %s11 = scalar_lea.sflag [#allocation4], 1
    %12 = vsyncpa %s11, 0
    loop: start=0, step=1, limit=4
    $region2: #{chunk_feedforward.1} parent=1 // loop_pre_header
      _
    $region3: #{chunk_feedforward.1} parent=1 // loop_header
      %s14 = sphi 0, %s18
      %p15 = scmp.ge.s32.totalorder %s14, 4
      %s24 = sphi 0, %s26
      %s27 = sphi 0, %s24
      %s28 = sphi 0, %s27
      %s44 = sphi 0, %s28
      %s48 = sphi 0, %s48
      %s50 = sphi 0, %s48
      %s51 = sphi 0, %s50
      %s65 = sphi 0, %s51
      %s69 = sphi 0, %s69
      %s71 = sphi 0, %s69
      %s72 = sphi 0, %s71
      %s86 = sphi 0, %s72
      %s90 = sphi 0, %s90
      %s92 = sphi 0, %s90
      %s93 = sphi 0, %s92
      %s107 = sphi 0, %s93
      %s111 = sphi 0, %s111
      %s113 = sphi 0, %s111
      %s114 = sphi 0, %s113
      %s128 = sphi 0, %s114
      %s134 = sphi 0, %s136
      %s137 = sphi 0, %s134
      %s138 = sphi 0, %s137
      %s154 = sphi 0, %s138
    $region4: #{chunk_feedforward.1} parent=1 // loop_header_branch
      %17 = sbr.rel (%p15) target = $region8
    $region5: #{chunk_feedforward.1} parent=1 // loop_body
      %s19 = ssub.s32 %s14, 1
      %s20 = ssub.s32 %s14, 2
      %s21 = sadd.s32 %s14, 1
      %s22 = ssub.s32 %s14, %s21
      %p23 = scmp.eq.s32.totalorder %s22, 0
      %s25 = sadd.s32 %s24, 1
      %s26 = scalar_select %p23, %s24, %s25
      %p29 = pneg %p23
      %p30 = scmp.eq.s32.totalorder %s14, 1
      %p31 = por %p29, %p30
      %p32 = scmp.ne.s32.totalorder %s24, %s27
      %p33 = scmp.eq.s32.totalorder %s14, 0
      %p34 = por %p32, %p33
      %p35 = scmp.ne.s32.totalorder %s24, %s27
      %p36 = scmp.eq.s32.totalorder %s19, 1
      %p37 = por %p35, %p36
      %p38 = scmp.ne.s32.totalorder %s27, %s28
      %p39 = scmp.eq.s32.totalorder %s19, 0
      %p40 = por %p38, %p39
      %p41 = scmp.ne.s32.totalorder %s27, %s28
      %p42 = scmp.eq.s32.totalorder %s20, 1
      %p43 = por %p41, %p42
      %p45 = scmp.ne.s32.totalorder %s28, %s44
      %p46 = scmp.eq.s32.totalorder %s20, 0
      %p47 = por %p45, %p46
      %s49 = sadd.s32 %s48, 1
      %p52 = scmp.eq.s32.totalorder %s14, 1
      %p53 = scmp.ne.s32.totalorder %s48, %s50
      %p54 = scmp.eq.s32.totalorder %s14, 0
      %p55 = por %p53, %p54
      %p56 = scmp.ne.s32.totalorder %s48, %s50
      %p57 = scmp.eq.s32.totalorder %s19, 1
      %p58 = por %p56, %p57
      %p59 = scmp.ne.s32.totalorder %s50, %s51
      %p60 = scmp.eq.s32.totalorder %s19, 0
      %p61 = por %p59, %p60
      %p62 = scmp.ne.s32.totalorder %s50, %s51
      %p63 = scmp.eq.s32.totalorder %s20, 1
      %p64 = por %p62, %p63
      %p66 = scmp.ne.s32.totalorder %s51, %s65
      %p67 = scmp.eq.s32.totalorder %s20, 0
      %p68 = por %p66, %p67
      %s70 = sadd.s32 %s69, 1
      %p73 = scmp.eq.s32.totalorder %s14, 1
      %p74 = scmp.ne.s32.totalorder %s69, %s71
      %p75 = scmp.eq.s32.totalorder %s14, 0
      %p76 = por %p74, %p75
      %p77 = scmp.ne.s32.totalorder %s69, %s71
      %p78 = scmp.eq.s32.totalorder %s19, 1
      %p79 = por %p77, %p78
      %p80 = scmp.ne.s32.totalorder %s71, %s72
      %p81 = scmp.eq.s32.totalorder %s19, 0
      %p82 = por %p80, %p81
      %p83 = scmp.ne.s32.totalorder %s71, %s72
      %p84 = scmp.eq.s32.totalorder %s20, 1
      %p85 = por %p83, %p84
      %p87 = scmp.ne.s32.totalorder %s72, %s86
      %p88 = scmp.eq.s32.totalorder %s20, 0
      %p89 = por %p87, %p88
      %s91 = sadd.s32 %s90, 1
      %p94 = scmp.eq.s32.totalorder %s14, 1
      %p95 = scmp.ne.s32.totalorder %s90, %s92
      %p96 = scmp.eq.s32.totalorder %s14, 0
      %p97 = por %p95, %p96
      %p98 = scmp.ne.s32.totalorder %s90, %s92
      %p99 = scmp.eq.s32.totalorder %s19, 1
      %p100 = por %p98, %p99
      %p101 = scmp.ne.s32.totalorder %s92, %s93
      %p102 = scmp.eq.s32.totalorder %s19, 0
      %p103 = por %p101, %p102
      %p104 = scmp.ne.s32.totalorder %s92, %s93
      %p105 = scmp.eq.s32.totalorder %s20, 1
      %p106 = por %p104, %p105
      %p108 = scmp.ne.s32.totalorder %s93, %s107
      %p109 = scmp.eq.s32.totalorder %s20, 0
      %p110 = por %p108, %p109
      %s112 = sadd.s32 %s111, 1
      %p115 = scmp.eq.s32.totalorder %s14, 1
      %p116 = scmp.ne.s32.totalorder %s111, %s113
      %p117 = scmp.eq.s32.totalorder %s14, 0
      %p118 = por %p116, %p117
      %p119 = scmp.ne.s32.totalorder %s111, %s113
      %p120 = scmp.eq.s32.totalorder %s19, 1
      %p121 = por %p119, %p120
      %p122 = scmp.ne.s32.totalorder %s113, %s114
      %p123 = scmp.eq.s32.totalorder %s19, 0
      %p124 = por %p122, %p123
      %p125 = scmp.ne.s32.totalorder %s113, %s114
      %p126 = scmp.eq.s32.totalorder %s20, 1
      %p127 = por %p125, %p126
      %p129 = scmp.ne.s32.totalorder %s114, %s128
      %p130 = scmp.eq.s32.totalorder %s20, 0
      %p131 = por %p129, %p130
      %s132 = ssub.s32 %s14, %s21
      %p133 = scmp.eq.s32.totalorder %s132, 0
      %s135 = sadd.s32 %s134, 1
      %s136 = scalar_select %p133, %s134, %s135
      %p139 = pneg %p133
      %p140 = scmp.eq.s32.totalorder %s14, 1
      %p141 = por %p139, %p140
      %p142 = scmp.ne.s32.totalorder %s134, %s137
      %p143 = scmp.eq.s32.totalorder %s14, 0
      %p144 = por %p142, %p143
      %p145 = scmp.ne.s32.totalorder %s134, %s137
      %p146 = scmp.eq.s32.totalorder %s19, 1
      %p147 = por %p145, %p146
      %p148 = scmp.ne.s32.totalorder %s137, %s138
      %p149 = scmp.eq.s32.totalorder %s19, 0
      %p150 = por %p148, %p149
      %p151 = scmp.ne.s32.totalorder %s137, %s138
      %p152 = scmp.eq.s32.totalorder %s20, 1
      %p153 = por %p151, %p152
      %p155 = scmp.ne.s32.totalorder %s138, %s154
      %p156 = scmp.eq.s32.totalorder %s20, 0
      %p157 = por %p155, %p156
      %p158 = scmp.le.s32.totalorder 1, %s14
      %p159 = scmp.lt.s32.totalorder %s14, 3
      %p160 = pnand %p158, %p159
      %p161 = pneg %p160
      // Predicated region
      $region9: #{chunk_feedforward.1} parent=5 // pred_check
        _
      $region10: #{chunk_feedforward.1} parent=5 // pred_check_branch
        %163 = sbr.rel (%p160) target = $region12
      $region11: #{chunk_feedforward.1} parent=5 // pred_region
        %s164 = ssub.s32 %s14, 1
        // Predicated region
        $region13: #{chunk_feedforward.1} parent=11 // pred_check
          %p165 = pneg %p61
        $region14: #{chunk_feedforward.1} parent=11 // pred_check_branch
          %167 = sbr.rel (%p165) target = $region16
        $region15: #{chunk_feedforward.1} parent=11 // pred_region
          _
        $region16: #{chunk_feedforward.1} parent=11 // pred_fallthru
          _
        // Predicated region
        $region17: #{chunk_feedforward.1} parent=11 // pred_check
          %p168 = pneg %p82
        $region18: #{chunk_feedforward.1} parent=11 // pred_check_branch
          %170 = sbr.rel (%p168) target = $region20
        $region19: #{chunk_feedforward.1} parent=11 // pred_region
          _
        $region20: #{chunk_feedforward.1} parent=11 // pred_fallthru
          _
        // Predicated region
        $region21: #{chunk_feedforward.1} parent=11 // pred_check
          %p171 = pneg %p103
        $region22: #{chunk_feedforward.1} parent=11 // pred_check_branch
          %173 = sbr.rel (%p171) target = $region24
        $region23: #{chunk_feedforward.1} parent=11 // pred_region
          _
        $region24: #{chunk_feedforward.1} parent=11 // pred_fallthru
          _
        // Predicated region
        $region25: #{chunk_feedforward.1} parent=11 // pred_check
          %p174 = pneg %p124
        $region26: #{chunk_feedforward.1} parent=11 // pred_check_branch
          %176 = sbr.rel (%p174) target = $region28
        $region27: #{chunk_feedforward.1} parent=11 // pred_region
          _
        $region28: #{chunk_feedforward.1} parent=11 // pred_fallthru
          _
      $region12: #{chunk_feedforward.1} parent=5 // pred_fallthru
        _
      %p177 = scmp.lt.s32.totalorder %s14, 2
      // Predicated region
      $region29: #{chunk_feedforward.1} parent=5 // pred_check
        %p178 = pneg %p177
      $region30: #{chunk_feedforward.1} parent=5 // pred_check_branch
        %180 = sbr.rel (%p178) target = $region32
      $region31: #{chunk_feedforward.1} parent=5 // pred_region
        // Predicated region
        $region33: #{chunk_feedforward.1} parent=31 // pred_check
          %p181 = pneg %p34
        $region34: #{chunk_feedforward.1} parent=31 // pred_check_branch
          %183 = sbr.rel (%p181) target = $region36
        $region35: #{chunk_feedforward.1} parent=31 // pred_region
          %s184 = smul.u32 2, %s14
          %p185 = scmp.lt.s32.totalorder %s184, 3
          %s186 = scalar_select %p185, %s184, 3
          %s187 = smul.addr %s186, 8
          %s188 = scalar_lea.vmem %s0, %s187
          %s189 = smul.u32 2, %s14
        $region36: #{chunk_feedforward.1} parent=31 // pred_fallthru
          _
      $region32: #{chunk_feedforward.1} parent=5 // pred_fallthru
        _
      %p190 = scmp.le.s32.totalorder 1, %s14
      %p191 = scmp.lt.s32.totalorder %s14, 3
      %p192 = pnand %p190, %p191
      %p193 = pneg %p192
      // Predicated region
      $region37: #{chunk_feedforward.1} parent=5 // pred_check
        _
      $region38: #{chunk_feedforward.1} parent=5 // pred_check_branch
        %195 = sbr.rel (%p192) target = $region40
      $region39: #{chunk_feedforward.1} parent=5 // pred_region
        %s196 = ssub.s32 %s14, 1
        %s197 = smul.u32 2, %s19
        %p198 = scmp.lt.s32.totalorder %s197, 3
        %s199 = scalar_select %p198, %s197, 3
        %s200 = smul.addr %s199, 8
        %s201 = scalar_lea.vmem %s0, %s200
        %p202 = pneg %p40
        %p203 = pneg %p37
        %p204 = pneg %p61
        %p205 = pneg %p58
        %p206 = pneg %p82
        %p207 = pneg %p79
        %p208 = pneg %p103
        %p209 = pneg %p100
        %p210 = pneg %p124
        %p211 = pneg %p121
        %p212 = pneg %p150
        %p213 = pneg %p147
        %s214 = sand.u32 %s137, 1
        %s215 = scalar_lea.sflag [#allocation4], %s214
        %s216 = sand.u32 %s137, 1
        %s217 = smul.addr %s216, 16
        %s218 = scalar_lea.vmem [#allocation3], %s217
        %s219 = smul.u32 2, %s19
        %p220 = scmp.lt.s32.totalorder %s219, 3
        %s221 = scalar_select %p220, %s219, 3
        %s222 = smul.addr %s221, 8
        %s223 = scalar_lea.vmem %s0, %s222
        %s224 = smul.u32 2, %s19
        %s225 = smul.u32 2, %s19
        %v226 = vld [vmem:[%s223] sm:$0xff]
        %v227 = vld [vmem:[%s223 + $0x8] sm:$0xff]
        %228 = vst [vmem:[#allocation2] sm:$0xff] 0.0
        %229 = vst [vmem:[#allocation2 + $0x8] sm:$0xff] 0.0
        %v230 = vld [vmem:[%s1] sm:$0xff]
        %v231 = vld [vmem:[%s1 + $0x8] sm:$0xff]
        %v232 = vld [vmem:[%s1 + $0x10] sm:$0xff]
        %v233 = vld [vmem:[%s1 + $0x18] sm:$0xff]
        %v234 = vld [vmem:[%s1 + $0x20] sm:$0xff]
        %v235 = vld [vmem:[%s1 + $0x28] sm:$0xff]
        %v236 = vld [vmem:[%s1 + $0x30] sm:$0xff]
        %v237 = vld [vmem:[%s1 + $0x38] sm:$0xff]
        %v238 = vld [vmem:[%s1 + $0x40] sm:$0xff]
        %v239 = vld [vmem:[%s1 + $0x48] sm:$0xff]
        %v240 = vld [vmem:[%s1 + $0x50] sm:$0xff]
        %v241 = vld [vmem:[%s1 + $0x58] sm:$0xff]
        %v242 = vld [vmem:[%s1 + $0x60] sm:$0xff]
        %v243 = vld [vmem:[%s1 + $0x68] sm:$0xff]
        %v244 = vld [vmem:[%s1 + $0x70] sm:$0xff]
        %v245 = vld [vmem:[%s1 + $0x78] sm:$0xff]
        %v246 = vld [vmem:[%s2] sm:$0x1]
        %v248 = vlaneseq
        %v249 = vshrl.u32 %v248, 7
        %v250 = vsub.s32 0, %v249
        %v251 = vrot.slane %v246, %v250
        %253 = vmatprep.subr.mxu0 0.0
        %254 = vmatpush1.msra.mxu0 %v230
        %255 = vmatprep.subr.mxu0 0.0
        %256 = vmatpush1.msra.mxu0 %v231
        %257 = vmatprep.subr.mxu0 0.0
        %258 = vmatpush1.msra.mxu0 %v232
        %259 = vmatprep.subr.mxu0 0.0
        %260 = vmatpush1.msra.mxu0 %v233
        %261 = vmatprep.subr.mxu0 0.0
        %262 = vmatpush1.msra.mxu0 %v234
        %263 = vmatprep.subr.mxu0 0.0
        %264 = vmatpush1.msra.mxu0 %v235
        %265 = vmatprep.subr.mxu0 0.0
        %266 = vmatpush1.msra.mxu0 %v236
        %267 = vmatprep.subr.mxu0 0.0
        %268 = vmatpush1.msra.mxu0 %v237
        %269 = vmatprep.subr.mxu0 0.0
        %270 = vmatpush1.msra.mxu0 %v238
        %271 = vmatprep.subr.mxu0 0.0
        %272 = vmatpush1.msra.mxu0 %v239
        %273 = vmatprep.subr.mxu0 0.0
        %274 = vmatpush1.msra.mxu0 %v240
        %275 = vmatprep.subr.mxu0 0.0
        %276 = vmatpush1.msra.mxu0 %v241
        %277 = vmatprep.subr.mxu0 0.0
        %278 = vmatpush1.msra.mxu0 %v242
        %279 = vmatprep.subr.mxu0 0.0
        %280 = vmatpush1.msra.mxu0 %v243
        %281 = vmatprep.subr.mxu0 0.0
        %282 = vmatpush1.msra.mxu0 %v244
        %283 = vmatprep.subr.mxu0 0.0
        %284 = vmatpush1.msra.mxu0 %v245
        %285 = vmatprep.subr.mxu0 0.0
        %286 = vmatpush1.msra.mxu0 0.0
        %287 = vmatprep.subr.mxu0 0.0
        %288 = vmatpush1.msra.mxu0 0.0
        %289 = vmatprep.subr.mxu0 0.0
        %290 = vmatpush1.msra.mxu0 0.0
        %291 = vmatprep.subr.mxu0 0.0
        %292 = vmatpush1.msra.mxu0 0.0
        %293 = vmatprep.subr.mxu0 0.0
        %294 = vmatpush1.msra.mxu0 0.0
        %295 = vmatprep.subr.mxu0 0.0
        %296 = vmatpush1.msra.mxu0 0.0
        %297 = vmatprep.subr.mxu0 0.0
        %298 = vmatpush1.msra.mxu0 0.0
        %299 = vmatprep.subr.mxu0 0.0
        %300 = vmatpush1.msra.mxu0 0.0
        %301 = vmatprep.subr.mxu0 0.0
        %302 = vmatpush1.msra.mxu0 0.0
        %303 = vmatprep.subr.mxu0 0.0
        %304 = vmatpush1.msra.mxu0 0.0
        %305 = vmatprep.subr.mxu0 0.0
        %306 = vmatpush1.msra.mxu0 0.0
        %307 = vmatprep.subr.mxu0 0.0
        %308 = vmatpush1.msra.mxu0 0.0
        %309 = vmatprep.subr.mxu0 0.0
        %310 = vmatpush1.msra.mxu0 0.0
        %311 = vmatprep.subr.mxu0 0.0
        %312 = vmatpush1.msra.mxu0 0.0
        %313 = vmatprep.subr.mxu0 0.0
        %314 = vmatpush1.msra.mxu0 0.0
        %315 = vmatprep.subr.mxu0 0.0
        %316 = vmatpush1.msra.mxu0 0.0
        %317 = vmatprep.mubr.f32.mxu0 0.0
        %318 = vmatmul.mubr.f32.gmra.mrb[0].mxu0 %v226
        %v319 = vpop.f32.mrb[0].mxu0
        %v320 = vadd.f32 %v251, %v319
        %v321 = vpop.f32.mrb[0].mxu0
        %322 = vmatprep.mubr.f32.mxu0 0.0
        %323 = vmatmul.mubr.f32.gmra.mrb[0].mxu0 %v227
        %v324 = vpop.f32.mrb[0].mxu0
        %v325 = vadd.f32 %v251, %v324
        %v326 = vpop.f32.mrb[0].mxu0
        %327 = vdwg.mxu0
        %v328 = vmul.f32 %v320, %v320
        %v329 = vmul.f32 %v325, %v325
        %v330 = vmul.f32 %v320, %v328
        %v331 = vmul.f32 %v325, %v329
        %v332 = vmul.f32 %v330, 0.044715
        %v333 = vmul.f32 %v331, 0.044715
        %v334 = vadd.f32 %v320, %v332
        %v335 = vadd.f32 %v325, %v333
        %v336 = vmul.f32 %v334, 0.7978846
        %v337 = vmul.f32 %v335, 0.7978846
        %v338 = vtanh.pop %v336
        %v339 = vtanh.pop %v337
        %v340 = vadd.f32 %v338, 1.0
        %v341 = vadd.f32 %v339, 1.0
        %v342 = vmul.f32 %v340, 0.5
        %v343 = vmul.f32 %v341, 0.5
        %v344 = vmul.f32 %v320, %v342
        %v345 = vmul.f32 %v325, %v343
        %v346 = vld [vmem:[#allocation2] sm:$0xff]
        %v347 = vld [vmem:[#allocation2 + $0x8] sm:$0xff]
        %v348 = vld [vmem:[%s3] sm:$0xff]
        %v349 = vld [vmem:[%s3 + $0x8] sm:$0xff]
        %v350 = vld [vmem:[%s3 + $0x10] sm:$0xff]
        %v351 = vld [vmem:[%s3 + $0x18] sm:$0xff]
        %v352 = vld [vmem:[%s3 + $0x20] sm:$0xff]
        %v353 = vld [vmem:[%s3 + $0x28] sm:$0xff]
        %v354 = vld [vmem:[%s3 + $0x30] sm:$0xff]
        %v355 = vld [vmem:[%s3 + $0x38] sm:$0xff]
        %v356 = vld [vmem:[%s3 + $0x40] sm:$0xff]
        %v357 = vld [vmem:[%s3 + $0x48] sm:$0xff]
        %v358 = vld [vmem:[%s3 + $0x50] sm:$0xff]
        %v359 = vld [vmem:[%s3 + $0x58] sm:$0xff]
        %v360 = vld [vmem:[%s3 + $0x60] sm:$0xff]
        %v361 = vld [vmem:[%s3 + $0x68] sm:$0xff]
        %v362 = vld [vmem:[%s3 + $0x70] sm:$0xff]
        %v363 = vld [vmem:[%s3 + $0x78] sm:$0xff]
        %364 = vmatprep.subr.mxu0 0.0
        %365 = vmatpush1.msra.mxu0 %v348
        %366 = vmatprep.subr.mxu0 0.0
        %367 = vmatpush1.msra.mxu0 %v349
        %368 = vmatprep.subr.mxu0 0.0
        %369 = vmatpush1.msra.mxu0 %v350
        %370 = vmatprep.subr.mxu0 0.0
        %371 = vmatpush1.msra.mxu0 %v351
        %372 = vmatprep.subr.mxu0 0.0
        %373 = vmatpush1.msra.mxu0 %v352
        %374 = vmatprep.subr.mxu0 0.0
        %375 = vmatpush1.msra.mxu0 %v353
        %376 = vmatprep.subr.mxu0 0.0
        %377 = vmatpush1.msra.mxu0 %v354
        %378 = vmatprep.subr.mxu0 0.0
        %379 = vmatpush1.msra.mxu0 %v355
        %380 = vmatprep.subr.mxu0 0.0
        %381 = vmatpush1.msra.mxu0 %v356
        %382 = vmatprep.subr.mxu0 0.0
        %383 = vmatpush1.msra.mxu0 %v357
        %384 = vmatprep.subr.mxu0 0.0
        %385 = vmatpush1.msra.mxu0 %v358
        %386 = vmatprep.subr.mxu0 0.0
        %387 = vmatpush1.msra.mxu0 %v359
        %388 = vmatprep.subr.mxu0 0.0
        %389 = vmatpush1.msra.mxu0 %v360
        %390 = vmatprep.subr.mxu0 0.0
        %391 = vmatpush1.msra.mxu0 %v361
        %392 = vmatprep.subr.mxu0 0.0
        %393 = vmatpush1.msra.mxu0 %v362
        %394 = vmatprep.subr.mxu0 0.0
        %395 = vmatpush1.msra.mxu0 %v363
        %396 = vmatprep.subr.mxu0 0.0
        %397 = vmatpush1.msra.mxu0 0.0
        %398 = vmatprep.subr.mxu0 0.0
        %399 = vmatpush1.msra.mxu0 0.0
        %400 = vmatprep.subr.mxu0 0.0
        %401 = vmatpush1.msra.mxu0 0.0
        %402 = vmatprep.subr.mxu0 0.0
        %403 = vmatpush1.msra.mxu0 0.0
        %404 = vmatprep.subr.mxu0 0.0
        %405 = vmatpush1.msra.mxu0 0.0
        %406 = vmatprep.subr.mxu0 0.0
        %407 = vmatpush1.msra.mxu0 0.0
        %408 = vmatprep.subr.mxu0 0.0
        %409 = vmatpush1.msra.mxu0 0.0
        %410 = vmatprep.subr.mxu0 0.0
        %411 = vmatpush1.msra.mxu0 0.0
        %412 = vmatprep.subr.mxu0 0.0
        %413 = vmatpush1.msra.mxu0 0.0
        %414 = vmatprep.subr.mxu0 0.0
        %415 = vmatpush1.msra.mxu0 0.0
        %416 = vmatprep.subr.mxu0 0.0
        %417 = vmatpush1.msra.mxu0 0.0
        %418 = vmatprep.subr.mxu0 0.0
        %419 = vmatpush1.msra.mxu0 0.0
        %420 = vmatprep.subr.mxu0 0.0
        %421 = vmatpush1.msra.mxu0 0.0
        %422 = vmatprep.subr.mxu0 0.0
        %423 = vmatpush1.msra.mxu0 0.0
        %424 = vmatprep.subr.mxu0 0.0
        %425 = vmatpush1.msra.mxu0 0.0
        %426 = vmatprep.subr.mxu0 0.0
        %427 = vmatpush1.msra.mxu0 0.0
        %428 = vmatprep.mubr.f32.mxu0 0.0
        %429 = vmatmul.mubr.f32.gmra.mrb[0].mxu0 %v344
        %v430 = vpop.f32.mrb[0].mxu0
        %v431 = vadd.f32 0.0, %v430
        %v432 = vpop.f32.mrb[0].mxu0
        %433 = vmatprep.mubr.f32.mxu0 0.0
        %434 = vmatmul.mubr.f32.gmra.mrb[0].mxu0 %v345
        %v435 = vpop.f32.mrb[0].mxu0
        %v436 = vadd.f32 0.0, %v435
        %v437 = vpop.f32.mrb[0].mxu0
        %438 = vdwg.mxu0
        %v439 = vadd.f32 %v346, %v431
        %v440 = vadd.f32 %v347, %v436
        %441 = vst [vmem:[#allocation2] sm:$0xff] %v439
        %442 = vst [vmem:[#allocation2 + $0x8] sm:$0xff] %v440
        %v443 = vld [vmem:[#allocation2] sm:$0xff]
        %v444 = vld [vmem:[#allocation2 + $0x8] sm:$0xff]
        %v445 = vld [vmem:[%s4] sm:$0x1]
        %v447 = vlaneseq
        %v448 = vshrl.u32 %v447, 7
        %v449 = vsub.s32 0, %v448
        %v450 = vrot.slane %v445, %v449
        %v452 = vadd.f32 %v443, %v450
        %v453 = vadd.f32 %v444, %v450
        %454 = vst [vmem:[%s218] sm:$0xff] %v452
        %455 = vst [vmem:[%s218 + $0x8] sm:$0xff] %v453
        %s456 = sand.u32 %s137, 1
        %s457 = scalar_lea.sflag [#allocation4], %s456
        %s458 = sand.u32 %s137, 1
        %s459 = smul.addr %s458, 16
        %s460 = scalar_lea.vmem [#allocation3], %s459
        // Predicated region
        $region41: #{chunk_feedforward.1} parent=39 // pred_check
          %p461 = pneg %p147
        $region42: #{chunk_feedforward.1} parent=39 // pred_check_branch
          %463 = sbr.rel (%p461) target = $region44
        $region43: #{chunk_feedforward.1} parent=39 // pred_region
          %s464 = smul.u32 2, %s19
          %s466 = ssub.s32 256, 256
          %467 = vsyncadd %s457, %s466
          %s468 = smul.addr %s464, 128
          %s469 = scalar_lea.hbm %s5, %s468
          %s470 = sshll.u32 %s460, 4
          %s471 = int_to_ptr.vmem [resolvable:$true] %s470
          %476 = dma.vmem_to_hbm [thread:$0]  %s471, 256, %s469, %s457, 128, 128, 8
        $region44: #{chunk_feedforward.1} parent=39 // pred_fallthru
          _
      $region40: #{chunk_feedforward.1} parent=5 // pred_fallthru
        _
      %p477 = scmp.le.s32.totalorder 2, %s14
      // Predicated region
      $region45: #{chunk_feedforward.1} parent=5 // pred_check
        %p478 = pneg %p477
      $region46: #{chunk_feedforward.1} parent=5 // pred_check_branch
        %480 = sbr.rel (%p478) target = $region48
      $region47: #{chunk_feedforward.1} parent=5 // pred_region
        %s481 = ssub.s32 %s14, 2
        // Predicated region
        $region49: #{chunk_feedforward.1} parent=47 // pred_check
          %p482 = pneg %p153
        $region50: #{chunk_feedforward.1} parent=47 // pred_check_branch
          %484 = sbr.rel (%p482) target = $region52
        $region51: #{chunk_feedforward.1} parent=47 // pred_region
          %s485 = sand.u32 %s138, 1
          %s486 = scalar_lea.sflag [#allocation4], %s485
          %s487 = sand.u32 %s138, 1
          %s488 = smul.addr %s487, 16
          %s489 = scalar_lea.vmem [#allocation3], %s488
          %490 = dma.done %s486, 256
        $region52: #{chunk_feedforward.1} parent=47 // pred_fallthru
          _
      $region48: #{chunk_feedforward.1} parent=5 // pred_fallthru
        _
    $region6: #{chunk_feedforward.1} parent=1 // loop_footer
      %s18 = sadd.s32 1, %s14
    $region7: #{chunk_feedforward.1} parent=1 // loop_footer_branch
      %13 = sbr.rel target = $region3
    $region8: #{chunk_feedforward.1} parent=1 // loop_exit
      _
    %491 = vsyncpa [#allocation4], 1
    %s492 = scalar_lea.sflag [#allocation4], 1
    %493 = vsyncpa %s492, 1

</llo_original>
